<compile_context>
chip_gen: v7x
topology: tpu7x:2x2x1
jax: 0.10.0
libtpu: 0.0.40
codegen_flags: <defaults>
</compile_context>

<pallas_src>
import jax
import jax.numpy as jnp
from jax.experimental import pallas as pl
from jax.experimental.pallas import tpu as pltpu


def _leaky_relu(v, slope=0.2):
    return jnp.where(v > 0, v, slope * v)


def _pick_batch_tile(n, c, w):
    """Largest divisor of n whose lane width c*nt*w stays <= 2048 (16 vregs)."""
    best = 1
    for nt in range(1, n + 1):
        if n % nt == 0 and c * nt * w <= 2048:
            best = nt
    return best


def _pack_weight_table(w, b, C, NT, W):
    """Build per-(channel-offset d, ky, kx) lane rows for the rolled-lane conv.

    Lane layout: l = (c*NT + t)*W + x  (c = output channel, t = image in tile,
    x = width).  Row (d, ky, kx) holds w[c, (c+d) % C, ky, kx] at every lane,
    with zeros at the W-boundary lanes that the kx = 0/2 lane roll would feed
    with out-of-image data (mask folded into the weights -> free in-kernel).
    """
    L = C * NT * W
    lane = jnp.arange(L)
    c_l = lane // (NT * W)          # output channel of each lane
    x_l = lane % W                  # width position of each lane
    rows = []
    for d in range(C):
        i_l = (c_l + d) % C         # input channel of each lane at offset d
        for ky in range(3):
            for kx in range(3):
                r = w[c_l, i_l, ky, kx]
                if kx == 0:         # tap reads x-1 -> invalid at x == 0
                    r = jnp.where(x_l == 0, 0.0, r)
                elif kx == 2:       # tap reads x+1 -> invalid at x == W-1
                    r = jnp.where(x_l == W - 1, 0.0, r)
                rows.append(r)
    return jnp.stack(rows, axis=0), b[c_l]      # (C*9, L), (L,)


def residual_block(x, w1, b1, w2, b2):
    """x: (N, C, H, W) f32; w*: (C, C, 3, 3) torch OIHW; b*: (C,). NCHW in/out."""
    N, C, H, W = x.shape
    x = x.astype(jnp.float32)
    NT = _pick_batch_tile(N, C, W)              # images per grid step
    NB = N // NT
    SEG = NT * W                                # lanes per channel
    L = C * SEG                                 # lane width of a kernel slab

    # Lane-dense repack (layout plumbing): (N,C,H,W) -> (NB, H, C*NT*W).
    xr = x.reshape(NB, NT, C, H, W).transpose(0, 3, 2, 1, 4).reshape(NB, H, L)

    wt1, br1 = _pack_weight_table(w1.astype(jnp.float32), b1.astype(jnp.float32), C, NT, W)
    wt2, br2 = _pack_weight_table(w2.astype(jnp.float32), b2.astype(jnp.float32), C, NT, W)
    wtab = jnp.concatenate([wt1, wt2], axis=0)  # (2*C*9, L)
    brow = jnp.stack([br1, br2], axis=0)        # (2, L)

    def conv3x3(inp, wtab_ref, brow_ref, conv_idx):
        # P[ky] accumulates the ky-th kernel-row contribution evaluated at the
        # *input* row; the dy = ky-1 row shift is applied once at the end.
        P = [None, None, None]
        for d in range(C):                      # channel offset
            for kx in range(3):                 # width tap
                off = d * SEG + (kx - 1)
                # V[h, l] = inp[h, (l + off) % L]  (wrap == channel modulo)
                v = inp if off == 0 else pltpu.roll(inp, shift=L - off, axis=1)
                for ky in range(3):             # height tap
                    ridx = (conv_idx * C + d) * 9 + ky * 3 + kx
                    term = wtab_ref[ridx:ridx + 1, :] * v       # (1,L)*(H,L)
                    P[ky] = term if P[ky] is None else P[ky] + term
        zrow = jnp.zeros((1, L), jnp.float32)
        up = jnp.concatenate([P[2][1:, :], zrow], axis=0)        # out[h] += P2[h+1]
        down = jnp.concatenate([zrow, P[0][:H - 1, :]], axis=0)  # out[h] += P0[h-1]
        return P[1] + up + down + brow_ref[conv_idx:conv_idx + 1, :]

    def kernel(x_ref, wtab_ref, brow_ref, o_ref):
        xv = x_ref[0]                                            # (H, L)
        h1 = _leaky_relu(conv3x3(xv, wtab_ref, brow_ref, 0))
        y = conv3x3(h1, wtab_ref, brow_ref, 1)
        o_ref[0] = _leaky_relu(xv + y)                           # dense (H, L) store

    out_r = pl.pallas_call(
        kernel,
        out_shape=jax.ShapeDtypeStruct((NB, H, L), jnp.float32),
        grid=(NB,),
        in_specs=[
            pl.BlockSpec((1, H, L), lambda b: (b, 0, 0)),
            pl.BlockSpec((2 * C * 9, L), lambda b: (0, 0)),
            pl.BlockSpec((2, L), lambda b: (0, 0)),
        ],
        out_specs=pl.BlockSpec((1, H, L), lambda b: (b, 0, 0)),
        compiler_params=pltpu.CompilerParams(
            dimension_semantics=("parallel",),   # batch tiles shard over TCs on v7x
        ),
    )(xr, wtab, brow)

    # Inverse layout plumbing back to NCHW.
    return out_r.reshape(NB, H, C, NT, W).transpose(0, 3, 2, 1, 4).reshape(N, C, H, W)


def _reference(x, w1, b1, w2, b2):
    """Pure-JAX reference (mirrors the PyTorch forward)."""
    def conv(x, w, b):
        y = jax.lax.conv_general_dilated(
            x, w, window_strides=(1, 1), padding='SAME',
            dimension_numbers=('NCHW', 'OIHW', 'NCHW'))
        return y + b.reshape(1, -1, 1, 1)

    h = jax.nn.leaky_relu(conv(x, w1, b1), 0.2)
    h = conv(h, w2, b2)
    return jax.nn.leaky_relu(x + h, 0.2)


if __name__ == "__main__":
    N, C, H, W = 2, 4, 16, 16
    K = 3

    key = jax.random.PRNGKey(0)
    kx_, kw1, kb1, kw2, kb2 = jax.random.split(key, 5)

    x = jax.random.normal(kx_, (N, C, H, W), dtype=jnp.float32)
    w1 = 0.1 * jax.random.normal(kw1, (C, C, K, K), dtype=jnp.float32)
    b1 = 0.1 * jax.random.normal(kb1, (C,), dtype=jnp.float32)
    w2 = 0.1 * jax.random.normal(kw2, (C, C, K, K), dtype=jnp.float32)
    b2 = 0.1 * jax.random.normal(kb2, (C,), dtype=jnp.float32)

    out = residual_block(x, w1, b1, w2, b2)
    out = jax.block_until_ready(out)

    ref = _reference(x, w1, b1, w2, b2)
    assert out.shape == (N, C, H, W)
    assert jnp.allclose(out, ref, atol=1e-4, rtol=1e-4), "mismatch vs reference"

    print("KERNEL_OK")
</pallas_src>

<mosaic_0001>
module attributes {stable_mosaic.version = 11 : i64} {
  func.func @kernel(%arg0: i32, %arg1: memref<1x16x128xf32, #tpu.memory_space<vmem>>, %arg2: memref<72x128xf32, #tpu.memory_space<vmem>>, %arg3: memref<2x128xf32, #tpu.memory_space<vmem>>, %arg4: memref<1x16x128xf32, #tpu.memory_space<vmem>>) attributes {dimension_semantics = [#tpu.dimension_semantics<parallel>], iteration_bounds = array<i64: 1>, scalar_prefetch = 0 : i64, scratch_operands = 0 : i64, tpu.core_type = #tpu.core_type<tc>, window_params = [{transform_indices = @transform_0, window_bounds = array<i64: 1, 16, 128>}, {pipeline_mode = #tpu.pipeline_mode<synchronous>, transform_indices = @transform_1, window_bounds = array<i64: 72, 128>}, {pipeline_mode = #tpu.pipeline_mode<synchronous>, transform_indices = @transform_2, window_bounds = array<i64: 2, 128>}, {transform_indices = @transform_3, window_bounds = array<i64: 1, 16, 128>}]} {
    %c0 = arith.constant 0 : index
    %c0_0 = arith.constant 0 : index
    %c0_1 = arith.constant 0 : index
    %0 = vector.load %arg1[%c0, %c0_0, %c0_1] : memref<1x16x128xf32, #tpu.memory_space<vmem>>, vector<1x16x128xf32>
    %1 = vector.shape_cast %0 : vector<1x16x128xf32> to vector<16x128xf32>
    %c129_i32 = arith.constant 129 : i32
    %2 = tpu.dynamic_rotate %1 by %c129_i32 dim 1 : vector<16x128xf32>, i32 -> vector<16x128xf32>
    %c0_2 = arith.constant 0 : index
    %c0_3 = arith.constant 0 : index
    %3 = vector.load %arg2[%c0_2, %c0_3] : memref<72x128xf32, #tpu.memory_space<vmem>>, vector<1x128xf32>
    %4 = vector.broadcast %3 : vector<1x128xf32> to vector<16x128xf32>
    %5 = arith.mulf %4, %2 : vector<16x128xf32>
    %c3 = arith.constant 3 : index
    %c0_4 = arith.constant 0 : index
    %6 = vector.load %arg2[%c3, %c0_4] : memref<72x128xf32, #tpu.memory_space<vmem>>, vector<1x128xf32>
    %7 = vector.broadcast %6 : vector<1x128xf32> to vector<16x128xf32>
    %8 = arith.mulf %7, %2 : vector<16x128xf32>
    %c6 = arith.constant 6 : index
    %c0_5 = arith.constant 0 : index
    %9 = vector.load %arg2[%c6, %c0_5] : memref<72x128xf32, #tpu.memory_space<vmem>>, vector<1x128xf32>
    %10 = vector.broadcast %9 : vector<1x128xf32> to vector<16x128xf32>
    %11 = arith.mulf %10, %2 : vector<16x128xf32>
    %c1 = arith.constant 1 : index
    %c0_6 = arith.constant 0 : index
    %12 = vector.load %arg2[%c1, %c0_6] : memref<72x128xf32, #tpu.memory_space<vmem>>, vector<1x128xf32>
    %13 = vector.broadcast %12 : vector<1x128xf32> to vector<16x128xf32>
    %14 = arith.mulf %13, %1 : vector<16x128xf32>
    %15 = arith.addf %5, %14 : vector<16x128xf32>
    %c4 = arith.constant 4 : index
    %c0_7 = arith.constant 0 : index
    %16 = vector.load %arg2[%c4, %c0_7] : memref<72x128xf32, #tpu.memory_space<vmem>>, vector<1x128xf32>
    %17 = vector.broadcast %16 : vector<1x128xf32> to vector<16x128xf32>
    %18 = arith.mulf %17, %1 : vector<16x128xf32>
    %19 = arith.addf %8, %18 : vector<16x128xf32>
    %c7 = arith.constant 7 : index
    %c0_8 = arith.constant 0 : index
    %20 = vector.load %arg2[%c7, %c0_8] : memref<72x128xf32, #tpu.memory_space<vmem>>, vector<1x128xf32>
    %21 = vector.broadcast %20 : vector<1x128xf32> to vector<16x128xf32>
    %22 = arith.mulf %21, %1 : vector<16x128xf32>
    %23 = arith.addf %11, %22 : vector<16x128xf32>
    %c127_i32 = arith.constant 127 : i32
    %24 = tpu.dynamic_rotate %1 by %c127_i32 dim 1 : vector<16x128xf32>, i32 -> vector<16x128xf32>
    %c2 = arith.constant 2 : index
    %c0_9 = arith.constant 0 : index
    %25 = vector.load %arg2[%c2, %c0_9] : memref<72x128xf32, #tpu.memory_space<vmem>>, vector<1x128xf32>
    %26 = vector.broadcast %25 : vector<1x128xf32> to vector<16x128xf32>
    %27 = arith.mulf %26, %24 : vector<16x128xf32>
    %28 = arith.addf %15, %27 : vector<16x128xf32>
    %c5 = arith.constant 5 : index
    %c0_10 = arith.constant 0 : index
    %29 = vector.load %arg2[%c5, %c0_10] : memref<72x128xf32, #tpu.memory_space<vmem>>, vector<1x128xf32>
    %30 = vector.broadcast %29 : vector<1x128xf32> to vector<16x128xf32>
    %31 = arith.mulf %30, %24 : vector<16x128xf32>
    %32 = arith.addf %19, %31 : vector<16x128xf32>
    %c8 = arith.constant 8 : index
    %c0_11 = arith.constant 0 : index
    %33 = vector.load %arg2[%c8, %c0_11] : memref<72x128xf32, #tpu.memory_space<vmem>>, vector<1x128xf32>
    %34 = vector.broadcast %33 : vector<1x128xf32> to vector<16x128xf32>
    %35 = arith.mulf %34, %24 : vector<16x128xf32>
    %36 = arith.addf %23, %35 : vector<16x128xf32>
    %c97_i32 = arith.constant 97 : i32
    %37 = tpu.dynamic_rotate %1 by %c97_i32 dim 1 : vector<16x128xf32>, i32 -> vector<16x128xf32>
    %c9 = arith.constant 9 : index
    %c0_12 = arith.constant 0 : index
    %38 = vector.load %arg2[%c9, %c0_12] : memref<72x128xf32, #tpu.memory_space<vmem>>, vector<1x128xf32>
    %39 = vector.broadcast %38 : vector<1x128xf32> to vector<16x128xf32>
    %40 = arith.mulf %39, %37 : vector<16x128xf32>
    %41 = arith.addf %28, %40 : vector<16x128xf32>
    %c12 = arith.constant 12 : index
    %c0_13 = arith.constant 0 : index
    %42 = vector.load %arg2[%c12, %c0_13] : memref<72x128xf32, #tpu.memory_space<vmem>>, vector<1x128xf32>
    %43 = vector.broadcast %42 : vector<1x128xf32> to vector<16x128xf32>
    %44 = arith.mulf %43, %37 : vector<16x128xf32>
    %45 = arith.addf %32, %44 : vector<16x128xf32>
    %c15 = arith.constant 15 : index
    %c0_14 = arith.constant 0 : index
    %46 = vector.load %arg2[%c15, %c0_14] : memref<72x128xf32, #tpu.memory_space<vmem>>, vector<1x128xf32>
    %47 = vector.broadcast %46 : vector<1x128xf32> to vector<16x128xf32>
    %48 = arith.mulf %47, %37 : vector<16x128xf32>
    %49 = arith.addf %36, %48 : vector<16x128xf32>
    %c96_i32 = arith.constant 96 : i32
    %50 = tpu.dynamic_rotate %1 by %c96_i32 dim 1 : vector<16x128xf32>, i32 -> vector<16x128xf32>
    %c10 = arith.constant 10 : index
    %c0_15 = arith.constant 0 : index
    %51 = vector.load %arg2[%c10, %c0_15] : memref<72x128xf32, #tpu.memory_space<vmem>>, vector<1x128xf32>
    %52 = vector.broadcast %51 : vector<1x128xf32> to vector<16x128xf32>
    %53 = arith.mulf %52, %50 : vector<16x128xf32>
    %54 = arith.addf %41, %53 : vector<16x128xf32>
    %c13 = arith.constant 13 : index
    %c0_16 = arith.constant 0 : index
    %55 = vector.load %arg2[%c13, %c0_16] : memref<72x128xf32, #tpu.memory_space<vmem>>, vector<1x128xf32>
    %56 = vector.broadcast %55 : vector<1x128xf32> to vector<16x128xf32>
    %57 = arith.mulf %56, %50 : vector<16x128xf32>
    %58 = arith.addf %45, %57 : vector<16x128xf32>
    %c16 = arith.constant 16 : index
    %c0_17 = arith.constant 0 : index
    %59 = vector.load %arg2[%c16, %c0_17] : memref<72x128xf32, #tpu.memory_space<vmem>>, vector<1x128xf32>
    %60 = vector.broadcast %59 : vector<1x128xf32> to vector<16x128xf32>
    %61 = arith.mulf %60, %50 : vector<16x128xf32>
    %62 = arith.addf %49, %61 : vector<16x128xf32>
    %c95_i32 = arith.constant 95 : i32
    %63 = tpu.dynamic_rotate %1 by %c95_i32 dim 1 : vector<16x128xf32>, i32 -> vector<16x128xf32>
    %c11 = arith.constant 11 : index
    %c0_18 = arith.constant 0 : index
    %64 = vector.load %arg2[%c11, %c0_18] : memref<72x128xf32, #tpu.memory_space<vmem>>, vector<1x128xf32>
    %65 = vector.broadcast %64 : vector<1x128xf32> to vector<16x128xf32>
    %66 = arith.mulf %65, %63 : vector<16x128xf32>
    %67 = arith.addf %54, %66 : vector<16x128xf32>
    %c14 = arith.constant 14 : index
    %c0_19 = arith.constant 0 : index
    %68 = vector.load %arg2[%c14, %c0_19] : memref<72x128xf32, #tpu.memory_space<vmem>>, vector<1x128xf32>
    %69 = vector.broadcast %68 : vector<1x128xf32> to vector<16x128xf32>
    %70 = arith.mulf %69, %63 : vector<16x128xf32>
    %71 = arith.addf %58, %70 : vector<16x128xf32>
    %c17 = arith.constant 17 : index
    %c0_20 = arith.constant 0 : index
    %72 = vector.load %arg2[%c17, %c0_20] : memref<72x128xf32, #tpu.memory_space<vmem>>, vector<1x128xf32>
    %73 = vector.broadcast %72 : vector<1x128xf32> to vector<16x128xf32>
    %74 = arith.mulf %73, %63 : vector<16x128xf32>
    %75 = arith.addf %62, %74 : vector<16x128xf32>
    %c65_i32 = arith.constant 65 : i32
    %76 = tpu.dynamic_rotate %1 by %c65_i32 dim 1 : vector<16x128xf32>, i32 -> vector<16x128xf32>
    %c18 = arith.constant 18 : index
    %c0_21 = arith.constant 0 : index
    %77 = vector.load %arg2[%c18, %c0_21] : memref<72x128xf32, #tpu.memory_space<vmem>>, vector<1x128xf32>
    %78 = vector.broadcast %77 : vector<1x128xf32> to vector<16x128xf32>
    %79 = arith.mulf %78, %76 : vector<16x128xf32>
    %80 = arith.addf %67, %79 : vector<16x128xf32>
    %c21 = arith.constant 21 : index
    %c0_22 = arith.constant 0 : index
    %81 = vector.load %arg2[%c21, %c0_22] : memref<72x128xf32, #tpu.memory_space<vmem>>, vector<1x128xf32>
    %82 = vector.broadcast %81 : vector<1x128xf32> to vector<16x128xf32>
    %83 = arith.mulf %82, %76 : vector<16x128xf32>
    %84 = arith.addf %71, %83 : vector<16x128xf32>
    %c24 = arith.constant 24 : index
    %c0_23 = arith.constant 0 : index
    %85 = vector.load %arg2[%c24, %c0_23] : memref<72x128xf32, #tpu.memory_space<vmem>>, vector<1x128xf32>
    %86 = vector.broadcast %85 : vector<1x128xf32> to vector<16x128xf32>
    %87 = arith.mulf %86, %76 : vector<16x128xf32>
    %88 = arith.addf %75, %87 : vector<16x128xf32>
    %c64_i32 = arith.constant 64 : i32
    %89 = tpu.dynamic_rotate %1 by %c64_i32 dim 1 : vector<16x128xf32>, i32 -> vector<16x128xf32>
    %c19 = arith.constant 19 : index
    %c0_24 = arith.constant 0 : index
    %90 = vector.load %arg2[%c19, %c0_24] : memref<72x128xf32, #tpu.memory_space<vmem>>, vector<1x128xf32>
    %91 = vector.broadcast %90 : vector<1x128xf32> to vector<16x128xf32>
    %92 = arith.mulf %91, %89 : vector<16x128xf32>
    %93 = arith.addf %80, %92 : vector<16x128xf32>
    %c22 = arith.constant 22 : index
    %c0_25 = arith.constant 0 : index
    %94 = vector.load %arg2[%c22, %c0_25] : memref<72x128xf32, #tpu.memory_space<vmem>>, vector<1x128xf32>
    %95 = vector.broadcast %94 : vector<1x128xf32> to vector<16x128xf32>
    %96 = arith.mulf %95, %89 : vector<16x128xf32>
    %97 = arith.addf %84, %96 : vector<16x128xf32>
    %c25 = arith.constant 25 : index
    %c0_26 = arith.constant 0 : index
    %98 = vector.load %arg2[%c25, %c0_26] : memref<72x128xf32, #tpu.memory_space<vmem>>, vector<1x128xf32>
    %99 = vector.broadcast %98 : vector<1x128xf32> to vector<16x128xf32>
    %100 = arith.mulf %99, %89 : vector<16x128xf32>
    %101 = arith.addf %88, %100 : vector<16x128xf32>
    %c63_i32 = arith.constant 63 : i32
    %102 = tpu.dynamic_rotate %1 by %c63_i32 dim 1 : vector<16x128xf32>, i32 -> vector<16x128xf32>
    %c20 = arith.constant 20 : index
    %c0_27 = arith.constant 0 : index
    %103 = vector.load %arg2[%c20, %c0_27] : memref<72x128xf32, #tpu.memory_space<vmem>>, vector<1x128xf32>
    %104 = vector.broadcast %103 : vector<1x128xf32> to vector<16x128xf32>
    %105 = arith.mulf %104, %102 : vector<16x128xf32>
    %106 = arith.addf %93, %105 : vector<16x128xf32>
    %c23 = arith.constant 23 : index
    %c0_28 = arith.constant 0 : index
    %107 = vector.load %arg2[%c23, %c0_28] : memref<72x128xf32, #tpu.memory_space<vmem>>, vector<1x128xf32>
    %108 = vector.broadcast %107 : vector<1x128xf32> to vector<16x128xf32>
    %109 = arith.mulf %108, %102 : vector<16x128xf32>
    %110 = arith.addf %97, %109 : vector<16x128xf32>
    %c26 = arith.constant 26 : index
    %c0_29 = arith.constant 0 : index
    %111 = vector.load %arg2[%c26, %c0_29] : memref<72x128xf32, #tpu.memory_space<vmem>>, vector<1x128xf32>
    %112 = vector.broadcast %111 : vector<1x128xf32> to vector<16x128xf32>
    %113 = arith.mulf %112, %102 : vector<16x128xf32>
    %114 = arith.addf %101, %113 : vector<16x128xf32>
    %c33_i32 = arith.constant 33 : i32
    %115 = tpu.dynamic_rotate %1 by %c33_i32 dim 1 : vector<16x128xf32>, i32 -> vector<16x128xf32>
    %c27 = arith.constant 27 : index
    %c0_30 = arith.constant 0 : index
    %116 = vector.load %arg2[%c27, %c0_30] : memref<72x128xf32, #tpu.memory_space<vmem>>, vector<1x128xf32>
    %117 = vector.broadcast %116 : vector<1x128xf32> to vector<16x128xf32>
    %118 = arith.mulf %117, %115 : vector<16x128xf32>
    %119 = arith.addf %106, %118 : vector<16x128xf32>
    %c30 = arith.constant 30 : index
    %c0_31 = arith.constant 0 : index
    %120 = vector.load %arg2[%c30, %c0_31] : memref<72x128xf32, #tpu.memory_space<vmem>>, vector<1x128xf32>
    %121 = vector.broadcast %120 : vector<1x128xf32> to vector<16x128xf32>
    %122 = arith.mulf %121, %115 : vector<16x128xf32>
    %123 = arith.addf %110, %122 : vector<16x128xf32>
    %c33 = arith.constant 33 : index
    %c0_32 = arith.constant 0 : index
    %124 = vector.load %arg2[%c33, %c0_32] : memref<72x128xf32, #tpu.memory_space<vmem>>, vector<1x128xf32>
    %125 = vector.broadcast %124 : vector<1x128xf32> to vector<16x128xf32>
    %126 = arith.mulf %125, %115 : vector<16x128xf32>
    %127 = arith.addf %114, %126 : vector<16x128xf32>
    %c32_i32 = arith.constant 32 : i32
    %128 = tpu.dynamic_rotate %1 by %c32_i32 dim 1 : vector<16x128xf32>, i32 -> vector<16x128xf32>
    %c28 = arith.constant 28 : index
    %c0_33 = arith.constant 0 : index
    %129 = vector.load %arg2[%c28, %c0_33] : memref<72x128xf32, #tpu.memory_space<vmem>>, vector<1x128xf32>
    %130 = vector.broadcast %129 : vector<1x128xf32> to vector<16x128xf32>
    %131 = arith.mulf %130, %128 : vector<16x128xf32>
    %132 = arith.addf %119, %131 : vector<16x128xf32>
    %c31 = arith.constant 31 : index
    %c0_34 = arith.constant 0 : index
    %133 = vector.load %arg2[%c31, %c0_34] : memref<72x128xf32, #tpu.memory_space<vmem>>, vector<1x128xf32>
    %134 = vector.broadcast %133 : vector<1x128xf32> to vector<16x128xf32>
    %135 = arith.mulf %134, %128 : vector<16x128xf32>
    %136 = arith.addf %123, %135 : vector<16x128xf32>
    %c34 = arith.constant 34 : index
    %c0_35 = arith.constant 0 : index
    %137 = vector.load %arg2[%c34, %c0_35] : memref<72x128xf32, #tpu.memory_space<vmem>>, vector<1x128xf32>
    %138 = vector.broadcast %137 : vector<1x128xf32> to vector<16x128xf32>
    %139 = arith.mulf %138, %128 : vector<16x128xf32>
    %140 = arith.addf %127, %139 : vector<16x128xf32>
    %c31_i32 = arith.constant 31 : i32
    %141 = tpu.dynamic_rotate %1 by %c31_i32 dim 1 : vector<16x128xf32>, i32 -> vector<16x128xf32>
    %c29 = arith.constant 29 : index
    %c0_36 = arith.constant 0 : index
    %142 = vector.load %arg2[%c29, %c0_36] : memref<72x128xf32, #tpu.memory_space<vmem>>, vector<1x128xf32>
    %143 = vector.broadcast %142 : vector<1x128xf32> to vector<16x128xf32>
    %144 = arith.mulf %143, %141 : vector<16x128xf32>
    %145 = arith.addf %132, %144 : vector<16x128xf32>
    %c32 = arith.constant 32 : index
    %c0_37 = arith.constant 0 : index
    %146 = vector.load %arg2[%c32, %c0_37] : memref<72x128xf32, #tpu.memory_space<vmem>>, vector<1x128xf32>
    %147 = vector.broadcast %146 : vector<1x128xf32> to vector<16x128xf32>
    %148 = arith.mulf %147, %141 : vector<16x128xf32>
    %149 = arith.addf %136, %148 : vector<16x128xf32>
    %c35 = arith.constant 35 : index
    %c0_38 = arith.constant 0 : index
    %150 = vector.load %arg2[%c35, %c0_38] : memref<72x128xf32, #tpu.memory_space<vmem>>, vector<1x128xf32>
    %151 = vector.broadcast %150 : vector<1x128xf32> to vector<16x128xf32>
    %152 = arith.mulf %151, %141 : vector<16x128xf32>
    %153 = arith.addf %140, %152 : vector<16x128xf32>
    %cst = arith.constant 0.000000e+00 : f32
    %154 = vector.broadcast %cst : f32 to vector<1x128xf32>
    %155 = vector.extract_strided_slice %153 {offsets = [1, 0], sizes = [15, 128], strides = [1, 1]} : vector<16x128xf32> to vector<15x128xf32>
    %156 = tpu.concatenate %155, %154 in 0 : vector<15x128xf32>, vector<1x128xf32> -> vector<16x128xf32>
    %157 = vector.extract_strided_slice %145 {offsets = [0, 0], sizes = [15, 128], strides = [1, 1]} : vector<16x128xf32> to vector<15x128xf32>
    %158 = tpu.concatenate %154, %157 in 0 : vector<1x128xf32>, vector<15x128xf32> -> vector<16x128xf32>
    %159 = arith.addf %149, %156 : vector<16x128xf32>
    %160 = arith.addf %159, %158 : vector<16x128xf32>
    %c0_39 = arith.constant 0 : index
    %c0_40 = arith.constant 0 : index
    %161 = vector.load %arg3[%c0_39, %c0_40] : memref<2x128xf32, #tpu.memory_space<vmem>>, vector<1x128xf32>
    %162 = vector.broadcast %161 : vector<1x128xf32> to vector<16x128xf32>
    %163 = arith.addf %160, %162 : vector<16x128xf32>
    %cst_41 = arith.constant 0.000000e+00 : f32
    %164 = vector.broadcast %cst_41 : f32 to vector<16x128xf32>
    %165 = arith.cmpf ogt, %163, %164 : vector<16x128xf32>
    %cst_42 = arith.constant 2.000000e-01 : f32
    %166 = vector.broadcast %cst_42 : f32 to vector<16x128xf32>
    %167 = arith.mulf %166, %163 : vector<16x128xf32>
    %168 = arith.select %165, %163, %167 : vector<16x128xi1>, vector<16x128xf32>
    %c129_i32_43 = arith.constant 129 : i32
    %169 = tpu.dynamic_rotate %168 by %c129_i32_43 dim 1 : vector<16x128xf32>, i32 -> vector<16x128xf32>
    %c36 = arith.constant 36 : index
    %c0_44 = arith.constant 0 : index
    %170 = vector.load %arg2[%c36, %c0_44] : memref<72x128xf32, #tpu.memory_space<vmem>>, vector<1x128xf32>
    %171 = vector.broadcast %170 : vector<1x128xf32> to vector<16x128xf32>
    %172 = arith.mulf %171, %169 : vector<16x128xf32>
    %c39 = arith.constant 39 : index
    %c0_45 = arith.constant 0 : index
    %173 = vector.load %arg2[%c39, %c0_45] : memref<72x128xf32, #tpu.memory_space<vmem>>, vector<1x128xf32>
    %174 = vector.broadcast %173 : vector<1x128xf32> to vector<16x128xf32>
    %175 = arith.mulf %174, %169 : vector<16x128xf32>
    %c42 = arith.constant 42 : index
    %c0_46 = arith.constant 0 : index
    %176 = vector.load %arg2[%c42, %c0_46] : memref<72x128xf32, #tpu.memory_space<vmem>>, vector<1x128xf32>
    %177 = vector.broadcast %176 : vector<1x128xf32> to vector<16x128xf32>
    %178 = arith.mulf %177, %169 : vector<16x128xf32>
    %c37 = arith.constant 37 : index
    %c0_47 = arith.constant 0 : index
    %179 = vector.load %arg2[%c37, %c0_47] : memref<72x128xf32, #tpu.memory_space<vmem>>, vector<1x128xf32>
    %180 = vector.broadcast %179 : vector<1x128xf32> to vector<16x128xf32>
    %181 = arith.mulf %180, %168 : vector<16x128xf32>
    %182 = arith.addf %172, %181 : vector<16x128xf32>
    %c40 = arith.constant 40 : index
    %c0_48 = arith.constant 0 : index
    %183 = vector.load %arg2[%c40, %c0_48] : memref<72x128xf32, #tpu.memory_space<vmem>>, vector<1x128xf32>
    %184 = vector.broadcast %183 : vector<1x128xf32> to vector<16x128xf32>
    %185 = arith.mulf %184, %168 : vector<16x128xf32>
    %186 = arith.addf %175, %185 : vector<16x128xf32>
    %c43 = arith.constant 43 : index
    %c0_49 = arith.constant 0 : index
    %187 = vector.load %arg2[%c43, %c0_49] : memref<72x128xf32, #tpu.memory_space<vmem>>, vector<1x128xf32>
    %188 = vector.broadcast %187 : vector<1x128xf32> to vector<16x128xf32>
    %189 = arith.mulf %188, %168 : vector<16x128xf32>
    %190 = arith.addf %178, %189 : vector<16x128xf32>
    %c127_i32_50 = arith.constant 127 : i32
    %191 = tpu.dynamic_rotate %168 by %c127_i32_50 dim 1 : vector<16x128xf32>, i32 -> vector<16x128xf32>
    %c38 = arith.constant 38 : index
    %c0_51 = arith.constant 0 : index
    %192 = vector.load %arg2[%c38, %c0_51] : memref<72x128xf32, #tpu.memory_space<vmem>>, vector<1x128xf32>
    %193 = vector.broadcast %192 : vector<1x128xf32> to vector<16x128xf32>
    %194 = arith.mulf %193, %191 : vector<16x128xf32>
    %195 = arith.addf %182, %194 : vector<16x128xf32>
    %c41 = arith.constant 41 : index
    %c0_52 = arith.constant 0 : index
    %196 = vector.load %arg2[%c41, %c0_52] : memref<72x128xf32, #tpu.memory_space<vmem>>, vector<1x128xf32>
    %197 = vector.broadcast %196 : vector<1x128xf32> to vector<16x128xf32>
    %198 = arith.mulf %197, %191 : vector<16x128xf32>
    %199 = arith.addf %186, %198 : vector<16x128xf32>
    %c44 = arith.constant 44 : index
    %c0_53 = arith.constant 0 : index
    %200 = vector.load %arg2[%c44, %c0_53] : memref<72x128xf32, #tpu.memory_space<vmem>>, vector<1x128xf32>
    %201 = vector.broadcast %200 : vector<1x128xf32> to vector<16x128xf32>
    %202 = arith.mulf %201, %191 : vector<16x128xf32>
    %203 = arith.addf %190, %202 : vector<16x128xf32>
    %c97_i32_54 = arith.constant 97 : i32
    %204 = tpu.dynamic_rotate %168 by %c97_i32_54 dim 1 : vector<16x128xf32>, i32 -> vector<16x128xf32>
    %c45 = arith.constant 45 : index
    %c0_55 = arith.constant 0 : index
    %205 = vector.load %arg2[%c45, %c0_55] : memref<72x128xf32, #tpu.memory_space<vmem>>, vector<1x128xf32>
    %206 = vector.broadcast %205 : vector<1x128xf32> to vector<16x128xf32>
    %207 = arith.mulf %206, %204 : vector<16x128xf32>
    %208 = arith.addf %195, %207 : vector<16x128xf32>
    %c48 = arith.constant 48 : index
    %c0_56 = arith.constant 0 : index
    %209 = vector.load %arg2[%c48, %c0_56] : memref<72x128xf32, #tpu.memory_space<vmem>>, vector<1x128xf32>
    %210 = vector.broadcast %209 : vector<1x128xf32> to vector<16x128xf32>
    %211 = arith.mulf %210, %204 : vector<16x128xf32>
    %212 = arith.addf %199, %211 : vector<16x128xf32>
    %c51 = arith.constant 51 : index
    %c0_57 = arith.constant 0 : index
    %213 = vector.load %arg2[%c51, %c0_57] : memref<72x128xf32, #tpu.memory_space<vmem>>, vector<1x128xf32>
    %214 = vector.broadcast %213 : vector<1x128xf32> to vector<16x128xf32>
    %215 = arith.mulf %214, %204 : vector<16x128xf32>
    %216 = arith.addf %203, %215 : vector<16x128xf32>
    %c96_i32_58 = arith.constant 96 : i32
    %217 = tpu.dynamic_rotate %168 by %c96_i32_58 dim 1 : vector<16x128xf32>, i32 -> vector<16x128xf32>
    %c46 = arith.constant 46 : index
    %c0_59 = arith.constant 0 : index
    %218 = vector.load %arg2[%c46, %c0_59] : memref<72x128xf32, #tpu.memory_space<vmem>>, vector<1x128xf32>
    %219 = vector.broadcast %218 : vector<1x128xf32> to vector<16x128xf32>
    %220 = arith.mulf %219, %217 : vector<16x128xf32>
    %221 = arith.addf %208, %220 : vector<16x128xf32>
    %c49 = arith.constant 49 : index
    %c0_60 = arith.constant 0 : index
    %222 = vector.load %arg2[%c49, %c0_60] : memref<72x128xf32, #tpu.memory_space<vmem>>, vector<1x128xf32>
    %223 = vector.broadcast %222 : vector<1x128xf32> to vector<16x128xf32>
    %224 = arith.mulf %223, %217 : vector<16x128xf32>
    %225 = arith.addf %212, %224 : vector<16x128xf32>
    %c52 = arith.constant 52 : index
    %c0_61 = arith.constant 0 : index
    %226 = vector.load %arg2[%c52, %c0_61] : memref<72x128xf32, #tpu.memory_space<vmem>>, vector<1x128xf32>
    %227 = vector.broadcast %226 : vector<1x128xf32> to vector<16x128xf32>
    %228 = arith.mulf %227, %217 : vector<16x128xf32>
    %229 = arith.addf %216, %228 : vector<16x128xf32>
    %c95_i32_62 = arith.constant 95 : i32
    %230 = tpu.dynamic_rotate %168 by %c95_i32_62 dim 1 : vector<16x128xf32>, i32 -> vector<16x128xf32>
    %c47 = arith.constant 47 : index
    %c0_63 = arith.constant 0 : index
    %231 = vector.load %arg2[%c47, %c0_63] : memref<72x128xf32, #tpu.memory_space<vmem>>, vector<1x128xf32>
    %232 = vector.broadcast %231 : vector<1x128xf32> to vector<16x128xf32>
    %233 = arith.mulf %232, %230 : vector<16x128xf32>
    %234 = arith.addf %221, %233 : vector<16x128xf32>
    %c50 = arith.constant 50 : index
    %c0_64 = arith.constant 0 : index
    %235 = vector.load %arg2[%c50, %c0_64] : memref<72x128xf32, #tpu.memory_space<vmem>>, vector<1x128xf32>
    %236 = vector.broadcast %235 : vector<1x128xf32> to vector<16x128xf32>
    %237 = arith.mulf %236, %230 : vector<16x128xf32>
    %238 = arith.addf %225, %237 : vector<16x128xf32>
    %c53 = arith.constant 53 : index
    %c0_65 = arith.constant 0 : index
    %239 = vector.load %arg2[%c53, %c0_65] : memref<72x128xf32, #tpu.memory_space<vmem>>, vector<1x128xf32>
    %240 = vector.broadcast %239 : vector<1x128xf32> to vector<16x128xf32>
    %241 = arith.mulf %240, %230 : vector<16x128xf32>
    %242 = arith.addf %229, %241 : vector<16x128xf32>
    %c65_i32_66 = arith.constant 65 : i32
    %243 = tpu.dynamic_rotate %168 by %c65_i32_66 dim 1 : vector<16x128xf32>, i32 -> vector<16x128xf32>
    %c54 = arith.constant 54 : index
    %c0_67 = arith.constant 0 : index
    %244 = vector.load %arg2[%c54, %c0_67] : memref<72x128xf32, #tpu.memory_space<vmem>>, vector<1x128xf32>
    %245 = vector.broadcast %244 : vector<1x128xf32> to vector<16x128xf32>
    %246 = arith.mulf %245, %243 : vector<16x128xf32>
    %247 = arith.addf %234, %246 : vector<16x128xf32>
    %c57 = arith.constant 57 : index
    %c0_68 = arith.constant 0 : index
    %248 = vector.load %arg2[%c57, %c0_68] : memref<72x128xf32, #tpu.memory_space<vmem>>, vector<1x128xf32>
    %249 = vector.broadcast %248 : vector<1x128xf32> to vector<16x128xf32>
    %250 = arith.mulf %249, %243 : vector<16x128xf32>
    %251 = arith.addf %238, %250 : vector<16x128xf32>
    %c60 = arith.constant 60 : index
    %c0_69 = arith.constant 0 : index
    %252 = vector.load %arg2[%c60, %c0_69] : memref<72x128xf32, #tpu.memory_space<vmem>>, vector<1x128xf32>
    %253 = vector.broadcast %252 : vector<1x128xf32> to vector<16x128xf32>
    %254 = arith.mulf %253, %243 : vector<16x128xf32>
    %255 = arith.addf %242, %254 : vector<16x128xf32>
    %c64_i32_70 = arith.constant 64 : i32
    %256 = tpu.dynamic_rotate %168 by %c64_i32_70 dim 1 : vector<16x128xf32>, i32 -> vector<16x128xf32>
    %c55 = arith.constant 55 : index
    %c0_71 = arith.constant 0 : index
    %257 = vector.load %arg2[%c55, %c0_71] : memref<72x128xf32, #tpu.memory_space<vmem>>, vector<1x128xf32>
    %258 = vector.broadcast %257 : vector<1x128xf32> to vector<16x128xf32>
    %259 = arith.mulf %258, %256 : vector<16x128xf32>
    %260 = arith.addf %247, %259 : vector<16x128xf32>
    %c58 = arith.constant 58 : index
    %c0_72 = arith.constant 0 : index
    %261 = vector.load %arg2[%c58, %c0_72] : memref<72x128xf32, #tpu.memory_space<vmem>>, vector<1x128xf32>
    %262 = vector.broadcast %261 : vector<1x128xf32> to vector<16x128xf32>
    %263 = arith.mulf %262, %256 : vector<16x128xf32>
    %264 = arith.addf %251, %263 : vector<16x128xf32>
    %c61 = arith.constant 61 : index
    %c0_73 = arith.constant 0 : index
    %265 = vector.load %arg2[%c61, %c0_73] : memref<72x128xf32, #tpu.memory_space<vmem>>, vector<1x128xf32>
    %266 = vector.broadcast %265 : vector<1x128xf32> to vector<16x128xf32>
    %267 = arith.mulf %266, %256 : vector<16x128xf32>
    %268 = arith.addf %255, %267 : vector<16x128xf32>
    %c63_i32_74 = arith.constant 63 : i32
    %269 = tpu.dynamic_rotate %168 by %c63_i32_74 dim 1 : vector<16x128xf32>, i32 -> vector<16x128xf32>
    %c56 = arith.constant 56 : index
    %c0_75 = arith.constant 0 : index
    %270 = vector.load %arg2[%c56, %c0_75] : memref<72x128xf32, #tpu.memory_space<vmem>>, vector<1x128xf32>
    %271 = vector.broadcast %270 : vector<1x128xf32> to vector<16x128xf32>
    %272 = arith.mulf %271, %269 : vector<16x128xf32>
    %273 = arith.addf %260, %272 : vector<16x128xf32>
    %c59 = arith.constant 59 : index
    %c0_76 = arith.constant 0 : index
    %274 = vector.load %arg2[%c59, %c0_76] : memref<72x128xf32, #tpu.memory_space<vmem>>, vector<1x128xf32>
    %275 = vector.broadcast %274 : vector<1x128xf32> to vector<16x128xf32>
    %276 = arith.mulf %275, %269 : vector<16x128xf32>
    %277 = arith.addf %264, %276 : vector<16x128xf32>
    %c62 = arith.constant 62 : index
    %c0_77 = arith.constant 0 : index
    %278 = vector.load %arg2[%c62, %c0_77] : memref<72x128xf32, #tpu.memory_space<vmem>>, vector<1x128xf32>
    %279 = vector.broadcast %278 : vector<1x128xf32> to vector<16x128xf32>
    %280 = arith.mulf %279, %269 : vector<16x128xf32>
    %281 = arith.addf %268, %280 : vector<16x128xf32>
    %c33_i32_78 = arith.constant 33 : i32
    %282 = tpu.dynamic_rotate %168 by %c33_i32_78 dim 1 : vector<16x128xf32>, i32 -> vector<16x128xf32>
    %c63 = arith.constant 63 : index
    %c0_79 = arith.constant 0 : index
    %283 = vector.load %arg2[%c63, %c0_79] : memref<72x128xf32, #tpu.memory_space<vmem>>, vector<1x128xf32>
    %284 = vector.broadcast %283 : vector<1x128xf32> to vector<16x128xf32>
    %285 = arith.mulf %284, %282 : vector<16x128xf32>
    %286 = arith.addf %273, %285 : vector<16x128xf32>
    %c66 = arith.constant 66 : index
    %c0_80 = arith.constant 0 : index
    %287 = vector.load %arg2[%c66, %c0_80] : memref<72x128xf32, #tpu.memory_space<vmem>>, vector<1x128xf32>
    %288 = vector.broadcast %287 : vector<1x128xf32> to vector<16x128xf32>
    %289 = arith.mulf %288, %282 : vector<16x128xf32>
    %290 = arith.addf %277, %289 : vector<16x128xf32>
    %c69 = arith.constant 69 : index
    %c0_81 = arith.constant 0 : index
    %291 = vector.load %arg2[%c69, %c0_81] : memref<72x128xf32, #tpu.memory_space<vmem>>, vector<1x128xf32>
    %292 = vector.broadcast %291 : vector<1x128xf32> to vector<16x128xf32>
    %293 = arith.mulf %292, %282 : vector<16x128xf32>
    %294 = arith.addf %281, %293 : vector<16x128xf32>
    %c32_i32_82 = arith.constant 32 : i32
    %295 = tpu.dynamic_rotate %168 by %c32_i32_82 dim 1 : vector<16x128xf32>, i32 -> vector<16x128xf32>
    %c64 = arith.constant 64 : index
    %c0_83 = arith.constant 0 : index
    %296 = vector.load %arg2[%c64, %c0_83] : memref<72x128xf32, #tpu.memory_space<vmem>>, vector<1x128xf32>
    %297 = vector.broadcast %296 : vector<1x128xf32> to vector<16x128xf32>
    %298 = arith.mulf %297, %295 : vector<16x128xf32>
    %299 = arith.addf %286, %298 : vector<16x128xf32>
    %c67 = arith.constant 67 : index
    %c0_84 = arith.constant 0 : index
    %300 = vector.load %arg2[%c67, %c0_84] : memref<72x128xf32, #tpu.memory_space<vmem>>, vector<1x128xf32>
    %301 = vector.broadcast %300 : vector<1x128xf32> to vector<16x128xf32>
    %302 = arith.mulf %301, %295 : vector<16x128xf32>
    %303 = arith.addf %290, %302 : vector<16x128xf32>
    %c70 = arith.constant 70 : index
    %c0_85 = arith.constant 0 : index
    %304 = vector.load %arg2[%c70, %c0_85] : memref<72x128xf32, #tpu.memory_space<vmem>>, vector<1x128xf32>
    %305 = vector.broadcast %304 : vector<1x128xf32> to vector<16x128xf32>
    %306 = arith.mulf %305, %295 : vector<16x128xf32>
    %307 = arith.addf %294, %306 : vector<16x128xf32>
    %c31_i32_86 = arith.constant 31 : i32
    %308 = tpu.dynamic_rotate %168 by %c31_i32_86 dim 1 : vector<16x128xf32>, i32 -> vector<16x128xf32>
    %c65 = arith.constant 65 : index
    %c0_87 = arith.constant 0 : index
    %309 = vector.load %arg2[%c65, %c0_87] : memref<72x128xf32, #tpu.memory_space<vmem>>, vector<1x128xf32>
    %310 = vector.broadcast %309 : vector<1x128xf32> to vector<16x128xf32>
    %311 = arith.mulf %310, %308 : vector<16x128xf32>
    %312 = arith.addf %299, %311 : vector<16x128xf32>
    %c68 = arith.constant 68 : index
    %c0_88 = arith.constant 0 : index
    %313 = vector.load %arg2[%c68, %c0_88] : memref<72x128xf32, #tpu.memory_space<vmem>>, vector<1x128xf32>
    %314 = vector.broadcast %313 : vector<1x128xf32> to vector<16x128xf32>
    %315 = arith.mulf %314, %308 : vector<16x128xf32>
    %316 = arith.addf %303, %315 : vector<16x128xf32>
    %c71 = arith.constant 71 : index
    %c0_89 = arith.constant 0 : index
    %317 = vector.load %arg2[%c71, %c0_89] : memref<72x128xf32, #tpu.memory_space<vmem>>, vector<1x128xf32>
    %318 = vector.broadcast %317 : vector<1x128xf32> to vector<16x128xf32>
    %319 = arith.mulf %318, %308 : vector<16x128xf32>
    %320 = arith.addf %307, %319 : vector<16x128xf32>
    %cst_90 = arith.constant 0.000000e+00 : f32
    %321 = vector.broadcast %cst_90 : f32 to vector<1x128xf32>
    %322 = vector.extract_strided_slice %320 {offsets = [1, 0], sizes = [15, 128], strides = [1, 1]} : vector<16x128xf32> to vector<15x128xf32>
    %323 = tpu.concatenate %322, %321 in 0 : vector<15x128xf32>, vector<1x128xf32> -> vector<16x128xf32>
    %324 = vector.extract_strided_slice %312 {offsets = [0, 0], sizes = [15, 128], strides = [1, 1]} : vector<16x128xf32> to vector<15x128xf32>
    %325 = tpu.concatenate %321, %324 in 0 : vector<1x128xf32>, vector<15x128xf32> -> vector<16x128xf32>
    %326 = arith.addf %316, %323 : vector<16x128xf32>
    %327 = arith.addf %326, %325 : vector<16x128xf32>
    %c1_91 = arith.constant 1 : index
    %c0_92 = arith.constant 0 : index
    %328 = vector.load %arg3[%c1_91, %c0_92] : memref<2x128xf32, #tpu.memory_space<vmem>>, vector<1x128xf32>
    %329 = vector.broadcast %328 : vector<1x128xf32> to vector<16x128xf32>
    %330 = arith.addf %327, %329 : vector<16x128xf32>
    %331 = arith.addf %1, %330 : vector<16x128xf32>
    %cst_93 = arith.constant 0.000000e+00 : f32
    %332 = vector.broadcast %cst_93 : f32 to vector<16x128xf32>
    %333 = arith.cmpf ogt, %331, %332 : vector<16x128xf32>
    %cst_94 = arith.constant 2.000000e-01 : f32
    %334 = vector.broadcast %cst_94 : f32 to vector<16x128xf32>
    %335 = arith.mulf %334, %331 : vector<16x128xf32>
    %336 = arith.select %333, %331, %335 : vector<16x128xi1>, vector<16x128xf32>
    %c0_95 = arith.constant 0 : index
    %c0_96 = arith.constant 0 : index
    %c0_97 = arith.constant 0 : index
    %337 = vector.load %arg4[%c0_95, %c0_96, %c0_97] : memref<1x16x128xf32, #tpu.memory_space<vmem>>, vector<1x16x128xf32>
    %338 = vector.shape_cast %337 : vector<1x16x128xf32> to vector<16x128xf32>
    %339 = vector.shape_cast %336 : vector<16x128xf32> to vector<1x16x128xf32>
    tpu.vector_store %arg4[%c0_95, %c0_96, %c0_97], %339 {strides = array<i32>} : memref<1x16x128xf32, #tpu.memory_space<vmem>>, vector<1x16x128xf32>,
    return
  }
  func.func @transform_0(%arg0: i32) -> (i32, i32, i32) {
    %c0_i32 = arith.constant 0 : i32
    %c0_i32_0 = arith.constant 0 : i32
    %c0_i32_1 = arith.constant 0 : i32
    return %arg0, %c0_i32, %c0_i32_0 : i32, i32, i32
  }
  func.func @transform_1(%arg0: i32) -> (i32, i32) {
    %c0_i32 = arith.constant 0 : i32
    %c0_i32_0 = arith.constant 0 : i32
    %c0_i32_1 = arith.constant 0 : i32
    return %c0_i32, %c0_i32_0 : i32, i32
  }
  func.func @transform_2(%arg0: i32) -> (i32, i32) {
    %c0_i32 = arith.constant 0 : i32
    %c0_i32_0 = arith.constant 0 : i32
    %c0_i32_1 = arith.constant 0 : i32
    return %c0_i32, %c0_i32_0 : i32, i32
  }
  func.func @transform_3(%arg0: i32) -> (i32, i32, i32) {
    %c0_i32 = arith.constant 0 : i32
    %c0_i32_0 = arith.constant 0 : i32
    %c0_i32_1 = arith.constant 0 : i32
    return %arg0, %c0_i32, %c0_i32_0 : i32, i32, i32
  }
}

</mosaic_0001>

<llo_original>
// kernel: tpu_custom_call.1
$region0: #{tpu_custom_call.1}
  #allocation0 [shape = 'u32[]', space=smem, size = 0x4, offset = 0x4, fixed_abs, tag = 'smem constant byte address 0x4 - core index']
  #allocation1 [shape = 'u32[144,128]{1,0:T(1,128)}', space=vmem, size = 0x12000, scoped, tag = 'internal scratch']
  %s0 = inlined_call_operand.hbm [shape: f32[1,16,128], index: 0, kind: input, shape index: {}]
  %s1 = inlined_call_operand.hbm [shape: f32[72,128], index: 1, kind: input, shape index: {}]
  %s2 = inlined_call_operand.vmem [shape: f32[2,128], index: 2, kind: input, shape index: {}]
  %s3 = inlined_call_operand.hbm [shape: f32[1,16,128], index: 3, kind: output, shape index: {}]
  %s4 = sld [smem:[#allocation0]]
  $region30: #{tpu_custom_call.1} parent=0
    _
  %s6 = ssub.s32 1, %s4
  %s7 = scalar_select 0, %s6, %s4
  $region1: #{tpu_custom_call.1} parent=0
    #allocation2 [shape = 'u8[8192]{0}', space=vmem, size = 0x2000, scoped, tag = 'input window, operand 0, single buffered']
    #allocation3 [shape = 's32[1]{0}', space=sflag, size = 0x4, scoped, tag = 'scoped memory for tpu_custom_call.1']
    #allocation4 [shape = 's32[1]{0}', space=sflag, size = 0x4, scoped, tag = 'scoped memory for tpu_custom_call.1']
    #allocation5 [shape = 'u8[36864]{0}', space=vmem, size = 0x9000, scoped, tag = 'input window, operand 1, single buffered']
    #allocation6 [shape = 's32[1]{0}', space=sflag, size = 0x4, scoped, tag = 'scoped memory for tpu_custom_call.1']
    #allocation7 [shape = 'u8[8192]{0}', space=vmem, size = 0x2000, scoped, tag = 'output window, operand 0, single buffered']
    %8 = vsyncpa [#allocation3], 0
    %9 = vsyncpa [#allocation6], 0
    %10 = vsyncpa [#allocation4], 0
    // Predicated region
    $region2: #{tpu_custom_call.1} parent=1 // pred_check
      _
    $region3: #{tpu_custom_call.1} parent=1 // pred_check_branch
      %12 = sbr.rel (0) target = $region5
    $region4: #{tpu_custom_call.1} parent=1 // pred_region
      %s14 = ssub.s32 256, 256
      %15 = vsyncadd [#allocation3], %s14
      %s16 = sshll.u32 [#allocation2], 4
      %s17 = int_to_ptr.vmem [resolvable:$true] %s16
      %22 = dma.hbm_to_vmem [thread:$0]  %s0, 256, %s17, [#allocation3], 128, 128, 8
    $region5: #{tpu_custom_call.1} parent=1 // pred_fallthru
      _
    // Predicated region
    $region6: #{tpu_custom_call.1} parent=1 // pred_check
      _
    $region7: #{tpu_custom_call.1} parent=1 // pred_check_branch
      %24 = sbr.rel (0) target = $region9
    $region8: #{tpu_custom_call.1} parent=1 // pred_region
      %s26 = ssub.s32 1152, 1152
      %27 = vsyncadd [#allocation6], %s26
      %s28 = sshll.u32 [#allocation5], 4
      %s29 = int_to_ptr.vmem [resolvable:$true] %s28
      %34 = dma.hbm_to_vmem [thread:$0]  %s1, 1152, %s29, [#allocation6], 128, 128, 8
    $region9: #{tpu_custom_call.1} parent=1 // pred_fallthru
      _
    // Predicated region
    $region10: #{tpu_custom_call.1} parent=1 // pred_check
      _
    $region11: #{tpu_custom_call.1} parent=1 // pred_check_branch
      %36 = sbr.rel (0) target = $region13
    $region12: #{tpu_custom_call.1} parent=1 // pred_region
      _
    $region13: #{tpu_custom_call.1} parent=1 // pred_fallthru
      _
    // Predicated region
    $region14: #{tpu_custom_call.1} parent=1 // pred_check
      _
    $region15: #{tpu_custom_call.1} parent=1 // pred_check_branch
      %38 = sbr.rel (0) target = $region17
    $region16: #{tpu_custom_call.1} parent=1 // pred_region
      %39 = dma.done [#allocation3], 256
    $region17: #{tpu_custom_call.1} parent=1 // pred_fallthru
      _
    // Predicated region
    $region18: #{tpu_custom_call.1} parent=1 // pred_check
      _
    $region19: #{tpu_custom_call.1} parent=1 // pred_check_branch
      %41 = sbr.rel (0) target = $region21
    $region20: #{tpu_custom_call.1} parent=1 // pred_region
      %42 = dma.done [#allocation6], 1152
    $region21: #{tpu_custom_call.1} parent=1 // pred_fallthru
      _
    %v43 = vld [vmem:[#allocation2] sm:$0xff]
    %v44 = vld [vmem:[#allocation2 + $0x8] sm:$0xff]
    %45 = vrot.lane.b32.xlu0 %v43, 1
    %v46 = vpop.permute.xlu0 %45
    %47 = vrot.lane.b32.xlu0 %v44, 1
    %v48 = vpop.permute.xlu0 %47
    %v49 = vld [vmem:[#allocation5] sm:$0x1]
    %v50 = vlaneseq
    %v51 = vshrl.u32 %v50, 7
    %v52 = vsub.s32 0, %v51
    %v53 = vrot.slane %v49, %v52
    %v54 = vmul.f32 %v53, %v46
    %v55 = vmul.f32 %v53, %v48
    %v56 = vld [vmem:[#allocation5 + $0x3] sm:$0x1]
    %v57 = vlaneseq
    %v58 = vshrl.u32 %v57, 7
    %v59 = vsub.s32 0, %v58
    %v60 = vrot.slane %v56, %v59
    %v61 = vmul.f32 %v60, %v46
    %v62 = vmul.f32 %v60, %v48
    %v63 = vld [vmem:[#allocation5 + $0x6] sm:$0x1]
    %v64 = vlaneseq
    %v65 = vshrl.u32 %v64, 7
    %v66 = vsub.s32 0, %v65
    %v67 = vrot.slane %v63, %v66
    %v68 = vmul.f32 %v67, %v46
    %v69 = vmul.f32 %v67, %v48
    %v70 = vld [vmem:[#allocation5 + $0x1] sm:$0x1]
    %v71 = vlaneseq
    %v72 = vshrl.u32 %v71, 7
    %v73 = vsub.s32 0, %v72
    %v74 = vrot.slane %v70, %v73
    %v75 = vmul.f32 %v74, %v43
    %v76 = vmul.f32 %v74, %v44
    %v77 = vadd.f32 %v54, %v75
    %v78 = vadd.f32 %v55, %v76
    %v79 = vld [vmem:[#allocation5 + $0x4] sm:$0x1]
    %v80 = vlaneseq
    %v81 = vshrl.u32 %v80, 7
    %v82 = vsub.s32 0, %v81
    %v83 = vrot.slane %v79, %v82
    %v84 = vmul.f32 %v83, %v43
    %v85 = vmul.f32 %v83, %v44
    %v86 = vadd.f32 %v61, %v84
    %v87 = vadd.f32 %v62, %v85
    %v88 = vld [vmem:[#allocation5 + $0x7] sm:$0x1]
    %v89 = vlaneseq
    %v90 = vshrl.u32 %v89, 7
    %v91 = vsub.s32 0, %v90
    %v92 = vrot.slane %v88, %v91
    %v93 = vmul.f32 %v92, %v43
    %v94 = vmul.f32 %v92, %v44
    %v95 = vadd.f32 %v68, %v93
    %v96 = vadd.f32 %v69, %v94
    %97 = vrot.lane.b32.xlu0 %v43, 127
    %v98 = vpop.permute.xlu0 %97
    %99 = vrot.lane.b32.xlu0 %v44, 127
    %v100 = vpop.permute.xlu0 %99
    %v101 = vld [vmem:[#allocation5 + $0x2] sm:$0x1]
    %v102 = vlaneseq
    %v103 = vshrl.u32 %v102, 7
    %v104 = vsub.s32 0, %v103
    %v105 = vrot.slane %v101, %v104
    %v106 = vmul.f32 %v105, %v98
    %v107 = vmul.f32 %v105, %v100
    %v108 = vadd.f32 %v77, %v106
    %v109 = vadd.f32 %v78, %v107
    %v110 = vld [vmem:[#allocation5 + $0x5] sm:$0x1]
    %v111 = vlaneseq
    %v112 = vshrl.u32 %v111, 7
    %v113 = vsub.s32 0, %v112
    %v114 = vrot.slane %v110, %v113
    %v115 = vmul.f32 %v114, %v98
    %v116 = vmul.f32 %v114, %v100
    %v117 = vadd.f32 %v86, %v115
    %v118 = vadd.f32 %v87, %v116
    %v119 = vld [vmem:[#allocation5 + $0x8] sm:$0x1]
    %v120 = vlaneseq
    %v121 = vshrl.u32 %v120, 7
    %v122 = vsub.s32 0, %v121
    %v123 = vrot.slane %v119, %v122
    %v124 = vmul.f32 %v123, %v98
    %v125 = vmul.f32 %v123, %v100
    %v126 = vadd.f32 %v95, %v124
    %v127 = vadd.f32 %v96, %v125
    %128 = vrot.lane.b32.xlu0 %v43, 97
    %v129 = vpop.permute.xlu0 %128
    %130 = vrot.lane.b32.xlu0 %v44, 97
    %v131 = vpop.permute.xlu0 %130
    %v132 = vld [vmem:[#allocation5 + $0x9] sm:$0x1]
    %v133 = vlaneseq
    %v134 = vshrl.u32 %v133, 7
    %v135 = vsub.s32 0, %v134
    %v136 = vrot.slane %v132, %v135
    %v137 = vmul.f32 %v136, %v129
    %v138 = vmul.f32 %v136, %v131
    %v139 = vadd.f32 %v108, %v137
    %v140 = vadd.f32 %v109, %v138
    %v141 = vld [vmem:[#allocation5 + $0xc] sm:$0x1]
    %v142 = vlaneseq
    %v143 = vshrl.u32 %v142, 7
    %v144 = vsub.s32 0, %v143
    %v145 = vrot.slane %v141, %v144
    %v146 = vmul.f32 %v145, %v129
    %v147 = vmul.f32 %v145, %v131
    %v148 = vadd.f32 %v117, %v146
    %v149 = vadd.f32 %v118, %v147
    %v150 = vld [vmem:[#allocation5 + $0xf] sm:$0x1]
    %v151 = vlaneseq
    %v152 = vshrl.u32 %v151, 7
    %v153 = vsub.s32 0, %v152
    %v154 = vrot.slane %v150, %v153
    %v155 = vmul.f32 %v154, %v129
    %v156 = vmul.f32 %v154, %v131
    %v157 = vadd.f32 %v126, %v155
    %v158 = vadd.f32 %v127, %v156
    %159 = vrot.lane.b32.xlu0 %v43, 96
    %v160 = vpop.permute.xlu0 %159
    %161 = vrot.lane.b32.xlu0 %v44, 96
    %v162 = vpop.permute.xlu0 %161
    %v163 = vld [vmem:[#allocation5 + $0xa] sm:$0x1]
    %v164 = vlaneseq
    %v165 = vshrl.u32 %v164, 7
    %v166 = vsub.s32 0, %v165
    %v167 = vrot.slane %v163, %v166
    %v168 = vmul.f32 %v167, %v160
    %v169 = vmul.f32 %v167, %v162
    %v170 = vadd.f32 %v139, %v168
    %v171 = vadd.f32 %v140, %v169
    %v172 = vld [vmem:[#allocation5 + $0xd] sm:$0x1]
    %v173 = vlaneseq
    %v174 = vshrl.u32 %v173, 7
    %v175 = vsub.s32 0, %v174
    %v176 = vrot.slane %v172, %v175
    %v177 = vmul.f32 %v176, %v160
    %v178 = vmul.f32 %v176, %v162
    %v179 = vadd.f32 %v148, %v177
    %v180 = vadd.f32 %v149, %v178
    %v181 = vld [vmem:[#allocation5 + $0x10] sm:$0x1]
    %v182 = vlaneseq
    %v183 = vshrl.u32 %v182, 7
    %v184 = vsub.s32 0, %v183
    %v185 = vrot.slane %v181, %v184
    %v186 = vmul.f32 %v185, %v160
    %v187 = vmul.f32 %v185, %v162
    %v188 = vadd.f32 %v157, %v186
    %v189 = vadd.f32 %v158, %v187
    %190 = vrot.lane.b32.xlu0 %v43, 95
    %v191 = vpop.permute.xlu0 %190
    %192 = vrot.lane.b32.xlu0 %v44, 95
    %v193 = vpop.permute.xlu0 %192
    %v194 = vld [vmem:[#allocation5 + $0xb] sm:$0x1]
    %v195 = vlaneseq
    %v196 = vshrl.u32 %v195, 7
    %v197 = vsub.s32 0, %v196
    %v198 = vrot.slane %v194, %v197
    %v199 = vmul.f32 %v198, %v191
    %v200 = vmul.f32 %v198, %v193
    %v201 = vadd.f32 %v170, %v199
    %v202 = vadd.f32 %v171, %v200
    %v203 = vld [vmem:[#allocation5 + $0xe] sm:$0x1]
    %v204 = vlaneseq
    %v205 = vshrl.u32 %v204, 7
    %v206 = vsub.s32 0, %v205
    %v207 = vrot.slane %v203, %v206
    %v208 = vmul.f32 %v207, %v191
    %v209 = vmul.f32 %v207, %v193
    %v210 = vadd.f32 %v179, %v208
    %v211 = vadd.f32 %v180, %v209
    %v212 = vld [vmem:[#allocation5 + $0x11] sm:$0x1]
    %v213 = vlaneseq
    %v214 = vshrl.u32 %v213, 7
    %v215 = vsub.s32 0, %v214
    %v216 = vrot.slane %v212, %v215
    %v217 = vmul.f32 %v216, %v191
    %v218 = vmul.f32 %v216, %v193
    %v219 = vadd.f32 %v188, %v217
    %v220 = vadd.f32 %v189, %v218
    %221 = vrot.lane.b32.xlu0 %v43, 65
    %v222 = vpop.permute.xlu0 %221
    %223 = vrot.lane.b32.xlu0 %v44, 65
    %v224 = vpop.permute.xlu0 %223
    %v225 = vld [vmem:[#allocation5 + $0x12] sm:$0x1]
    %v226 = vlaneseq
    %v227 = vshrl.u32 %v226, 7
    %v228 = vsub.s32 0, %v227
    %v229 = vrot.slane %v225, %v228
    %v230 = vmul.f32 %v229, %v222
    %v231 = vmul.f32 %v229, %v224
    %v232 = vadd.f32 %v201, %v230
    %v233 = vadd.f32 %v202, %v231
    %v234 = vld [vmem:[#allocation5 + $0x15] sm:$0x1]
    %v235 = vlaneseq
    %v236 = vshrl.u32 %v235, 7
    %v237 = vsub.s32 0, %v236
    %v238 = vrot.slane %v234, %v237
    %v239 = vmul.f32 %v238, %v222
    %v240 = vmul.f32 %v238, %v224
    %v241 = vadd.f32 %v210, %v239
    %v242 = vadd.f32 %v211, %v240
    %v243 = vld [vmem:[#allocation5 + $0x18] sm:$0x1]
    %v244 = vlaneseq
    %v245 = vshrl.u32 %v244, 7
    %v246 = vsub.s32 0, %v245
    %v247 = vrot.slane %v243, %v246
    %v248 = vmul.f32 %v247, %v222
    %v249 = vmul.f32 %v247, %v224
    %v250 = vadd.f32 %v219, %v248
    %v251 = vadd.f32 %v220, %v249
    %252 = vrot.lane.b32.xlu0 %v43, 64
    %v253 = vpop.permute.xlu0 %252
    %254 = vrot.lane.b32.xlu0 %v44, 64
    %v255 = vpop.permute.xlu0 %254
    %v256 = vld [vmem:[#allocation5 + $0x13] sm:$0x1]
    %v257 = vlaneseq
    %v258 = vshrl.u32 %v257, 7
    %v259 = vsub.s32 0, %v258
    %v260 = vrot.slane %v256, %v259
    %v261 = vmul.f32 %v260, %v253
    %v262 = vmul.f32 %v260, %v255
    %v263 = vadd.f32 %v232, %v261
    %v264 = vadd.f32 %v233, %v262
    %v265 = vld [vmem:[#allocation5 + $0x16] sm:$0x1]
    %v266 = vlaneseq
    %v267 = vshrl.u32 %v266, 7
    %v268 = vsub.s32 0, %v267
    %v269 = vrot.slane %v265, %v268
    %v270 = vmul.f32 %v269, %v253
    %v271 = vmul.f32 %v269, %v255
    %v272 = vadd.f32 %v241, %v270
    %v273 = vadd.f32 %v242, %v271
    %v274 = vld [vmem:[#allocation5 + $0x19] sm:$0x1]
    %v275 = vlaneseq
    %v276 = vshrl.u32 %v275, 7
    %v277 = vsub.s32 0, %v276
    %v278 = vrot.slane %v274, %v277
    %v279 = vmul.f32 %v278, %v253
    %v280 = vmul.f32 %v278, %v255
    %v281 = vadd.f32 %v250, %v279
    %v282 = vadd.f32 %v251, %v280
    %283 = vrot.lane.b32.xlu0 %v43, 63
    %v284 = vpop.permute.xlu0 %283
    %285 = vrot.lane.b32.xlu0 %v44, 63
    %v286 = vpop.permute.xlu0 %285
    %v287 = vld [vmem:[#allocation5 + $0x14] sm:$0x1]
    %v288 = vlaneseq
    %v289 = vshrl.u32 %v288, 7
    %v290 = vsub.s32 0, %v289
    %v291 = vrot.slane %v287, %v290
    %v292 = vmul.f32 %v291, %v284
    %v293 = vmul.f32 %v291, %v286
    %v294 = vadd.f32 %v263, %v292
    %v295 = vadd.f32 %v264, %v293
    %v296 = vld [vmem:[#allocation5 + $0x17] sm:$0x1]
    %v297 = vlaneseq
    %v298 = vshrl.u32 %v297, 7
    %v299 = vsub.s32 0, %v298
    %v300 = vrot.slane %v296, %v299
    %v301 = vmul.f32 %v300, %v284
    %v302 = vmul.f32 %v300, %v286
    %v303 = vadd.f32 %v272, %v301
    %v304 = vadd.f32 %v273, %v302
    %v305 = vld [vmem:[#allocation5 + $0x1a] sm:$0x1]
    %v306 = vlaneseq
    %v307 = vshrl.u32 %v306, 7
    %v308 = vsub.s32 0, %v307
    %v309 = vrot.slane %v305, %v308
    %v310 = vmul.f32 %v309, %v284
    %v311 = vmul.f32 %v309, %v286
    %v312 = vadd.f32 %v281, %v310
    %v313 = vadd.f32 %v282, %v311
    %314 = vrot.lane.b32.xlu0 %v43, 33
    %v315 = vpop.permute.xlu0 %314
    %316 = vrot.lane.b32.xlu0 %v44, 33
    %v317 = vpop.permute.xlu0 %316
    %v318 = vld [vmem:[#allocation5 + $0x1b] sm:$0x1]
    %v319 = vlaneseq
    %v320 = vshrl.u32 %v319, 7
    %v321 = vsub.s32 0, %v320
    %v322 = vrot.slane %v318, %v321
    %v323 = vmul.f32 %v322, %v315
    %v324 = vmul.f32 %v322, %v317
    %v325 = vadd.f32 %v294, %v323
    %v326 = vadd.f32 %v295, %v324
    %v327 = vld [vmem:[#allocation5 + $0x1e] sm:$0x1]
    %v328 = vlaneseq
    %v329 = vshrl.u32 %v328, 7
    %v330 = vsub.s32 0, %v329
    %v331 = vrot.slane %v327, %v330
    %v332 = vmul.f32 %v331, %v315
    %v333 = vmul.f32 %v331, %v317
    %v334 = vadd.f32 %v303, %v332
    %v335 = vadd.f32 %v304, %v333
    %v336 = vld [vmem:[#allocation5 + $0x21] sm:$0x1]
    %v337 = vlaneseq
    %v338 = vshrl.u32 %v337, 7
    %v339 = vsub.s32 0, %v338
    %v340 = vrot.slane %v336, %v339
    %v341 = vmul.f32 %v340, %v315
    %v342 = vmul.f32 %v340, %v317
    %v343 = vadd.f32 %v312, %v341
    %v344 = vadd.f32 %v313, %v342
    %345 = vrot.lane.b32.xlu0 %v43, 32
    %v346 = vpop.permute.xlu0 %345
    %347 = vrot.lane.b32.xlu0 %v44, 32
    %v348 = vpop.permute.xlu0 %347
    %v349 = vld [vmem:[#allocation5 + $0x1c] sm:$0x1]
    %v350 = vlaneseq
    %v351 = vshrl.u32 %v350, 7
    %v352 = vsub.s32 0, %v351
    %v353 = vrot.slane %v349, %v352
    %v354 = vmul.f32 %v353, %v346
    %v355 = vmul.f32 %v353, %v348
    %v356 = vadd.f32 %v325, %v354
    %v357 = vadd.f32 %v326, %v355
    %v358 = vld [vmem:[#allocation5 + $0x1f] sm:$0x1]
    %v359 = vlaneseq
    %v360 = vshrl.u32 %v359, 7
    %v361 = vsub.s32 0, %v360
    %v362 = vrot.slane %v358, %v361
    %v363 = vmul.f32 %v362, %v346
    %v364 = vmul.f32 %v362, %v348
    %v365 = vadd.f32 %v334, %v363
    %v366 = vadd.f32 %v335, %v364
    %v367 = vld [vmem:[#allocation5 + $0x22] sm:$0x1]
    %v368 = vlaneseq
    %v369 = vshrl.u32 %v368, 7
    %v370 = vsub.s32 0, %v369
    %v371 = vrot.slane %v367, %v370
    %v372 = vmul.f32 %v371, %v346
    %v373 = vmul.f32 %v371, %v348
    %v374 = vadd.f32 %v343, %v372
    %v375 = vadd.f32 %v344, %v373
    %376 = vrot.lane.b32.xlu0 %v43, 31
    %v377 = vpop.permute.xlu0 %376
    %378 = vrot.lane.b32.xlu0 %v44, 31
    %v379 = vpop.permute.xlu0 %378
    %v380 = vld [vmem:[#allocation5 + $0x1d] sm:$0x1]
    %v381 = vlaneseq
    %v382 = vshrl.u32 %v381, 7
    %v383 = vsub.s32 0, %v382
    %v384 = vrot.slane %v380, %v383
    %v385 = vmul.f32 %v384, %v377
    %v386 = vmul.f32 %v384, %v379
    %v387 = vadd.f32 %v356, %v385
    %v388 = vadd.f32 %v357, %v386
    %v389 = vld [vmem:[#allocation5 + $0x20] sm:$0x1]
    %v390 = vlaneseq
    %v391 = vshrl.u32 %v390, 7
    %v392 = vsub.s32 0, %v391
    %v393 = vrot.slane %v389, %v392
    %v394 = vmul.f32 %v393, %v377
    %v395 = vmul.f32 %v393, %v379
    %v396 = vadd.f32 %v365, %v394
    %v397 = vadd.f32 %v366, %v395
    %v398 = vld [vmem:[#allocation5 + $0x23] sm:$0x1]
    %v399 = vlaneseq
    %v400 = vshrl.u32 %v399, 7
    %v401 = vsub.s32 0, %v400
    %v402 = vrot.slane %v398, %v401
    %v403 = vmul.f32 %v402, %v377
    %v404 = vmul.f32 %v402, %v379
    %v405 = vadd.f32 %v374, %v403
    %v406 = vadd.f32 %v375, %v404
    %vm409 = vcmask 1046528
    %v410 = vrot.slane %v405, 1
    %v411 = vrot.slane %v406, 1
    %v412 = vsel %vm409, %v410, %v411
    %v415 = vsel %vm409, %v411, 0.0
    %vm418 = vcmask 1040384
    %v419 = vrot.slane %v387, 7
    %v420 = vrot.slane %v388, 7
    %v421 = vsel %vm418, %v419, %v420
    %v424 = vsel %vm418, 0.0, %v419
    %v425 = vadd.f32 %v396, %v412
    %v426 = vadd.f32 %v397, %v415
    %v427 = vadd.f32 %v425, %v424
    %v428 = vadd.f32 %v426, %v421
    %v429 = vld [vmem:[%s2] sm:$0x1]
    %v430 = vlaneseq
    %v431 = vshrl.u32 %v430, 7
    %v432 = vsub.s32 0, %v431
    %v433 = vrot.slane %v429, %v432
    %v434 = vadd.f32 %v427, %v433
    %v435 = vadd.f32 %v428, %v433
    %vm436 = vcmp.gt.f32.partialorder %v434, 0.0
    %vm437 = vcmp.gt.f32.partialorder %v435, 0.0
    %v438 = vmul.f32 %v434, 0.2
    %v439 = vmul.f32 %v435, 0.2
    %v440 = vsel %vm436, %v434, %v438
    %v441 = vsel %vm437, %v435, %v439
    %442 = vrot.lane.b32.xlu0 %v440, 1
    %v443 = vpop.permute.xlu0 %442
    %444 = vrot.lane.b32.xlu0 %v441, 1
    %v445 = vpop.permute.xlu0 %444
    %v446 = vld [vmem:[#allocation5 + $0x24] sm:$0x1]
    %v447 = vlaneseq
    %v448 = vshrl.u32 %v447, 7
    %v449 = vsub.s32 0, %v448
    %v450 = vrot.slane %v446, %v449
    %v451 = vmul.f32 %v450, %v443
    %v452 = vmul.f32 %v450, %v445
    %v453 = vld [vmem:[#allocation5 + $0x27] sm:$0x1]
    %v454 = vlaneseq
    %v455 = vshrl.u32 %v454, 7
    %v456 = vsub.s32 0, %v455
    %v457 = vrot.slane %v453, %v456
    %v458 = vmul.f32 %v457, %v443
    %v459 = vmul.f32 %v457, %v445
    %v460 = vld [vmem:[#allocation5 + $0x2a] sm:$0x1]
    %v461 = vlaneseq
    %v462 = vshrl.u32 %v461, 7
    %v463 = vsub.s32 0, %v462
    %v464 = vrot.slane %v460, %v463
    %v465 = vmul.f32 %v464, %v443
    %v466 = vmul.f32 %v464, %v445
    %v467 = vld [vmem:[#allocation5 + $0x25] sm:$0x1]
    %v468 = vlaneseq
    %v469 = vshrl.u32 %v468, 7
    %v470 = vsub.s32 0, %v469
    %v471 = vrot.slane %v467, %v470
    %v472 = vmul.f32 %v471, %v440
    %v473 = vmul.f32 %v471, %v441
    %v474 = vadd.f32 %v451, %v472
    %v475 = vadd.f32 %v452, %v473
    %v476 = vld [vmem:[#allocation5 + $0x28] sm:$0x1]
    %v477 = vlaneseq
    %v478 = vshrl.u32 %v477, 7
    %v479 = vsub.s32 0, %v478
    %v480 = vrot.slane %v476, %v479
    %v481 = vmul.f32 %v480, %v440
    %v482 = vmul.f32 %v480, %v441
    %v483 = vadd.f32 %v458, %v481
    %v484 = vadd.f32 %v459, %v482
    %v485 = vld [vmem:[#allocation5 + $0x2b] sm:$0x1]
    %v486 = vlaneseq
    %v487 = vshrl.u32 %v486, 7
    %v488 = vsub.s32 0, %v487
    %v489 = vrot.slane %v485, %v488
    %v490 = vmul.f32 %v489, %v440
    %v491 = vmul.f32 %v489, %v441
    %v492 = vadd.f32 %v465, %v490
    %v493 = vadd.f32 %v466, %v491
    %494 = vrot.lane.b32.xlu0 %v440, 127
    %v495 = vpop.permute.xlu0 %494
    %496 = vrot.lane.b32.xlu0 %v441, 127
    %v497 = vpop.permute.xlu0 %496
    %v498 = vld [vmem:[#allocation5 + $0x26] sm:$0x1]
    %v499 = vlaneseq
    %v500 = vshrl.u32 %v499, 7
    %v501 = vsub.s32 0, %v500
    %v502 = vrot.slane %v498, %v501
    %v503 = vmul.f32 %v502, %v495
    %v504 = vmul.f32 %v502, %v497
    %v505 = vadd.f32 %v474, %v503
    %v506 = vadd.f32 %v475, %v504
    %v507 = vld [vmem:[#allocation5 + $0x29] sm:$0x1]
    %v508 = vlaneseq
    %v509 = vshrl.u32 %v508, 7
    %v510 = vsub.s32 0, %v509
    %v511 = vrot.slane %v507, %v510
    %v512 = vmul.f32 %v511, %v495
    %v513 = vmul.f32 %v511, %v497
    %v514 = vadd.f32 %v483, %v512
    %v515 = vadd.f32 %v484, %v513
    %v516 = vld [vmem:[#allocation5 + $0x2c] sm:$0x1]
    %v517 = vlaneseq
    %v518 = vshrl.u32 %v517, 7
    %v519 = vsub.s32 0, %v518
    %v520 = vrot.slane %v516, %v519
    %v521 = vmul.f32 %v520, %v495
    %v522 = vmul.f32 %v520, %v497
    %v523 = vadd.f32 %v492, %v521
    %v524 = vadd.f32 %v493, %v522
    %525 = vrot.lane.b32.xlu0 %v440, 97
    %v526 = vpop.permute.xlu0 %525
    %527 = vrot.lane.b32.xlu0 %v441, 97
    %v528 = vpop.permute.xlu0 %527
    %v529 = vld [vmem:[#allocation5 + $0x2d] sm:$0x1]
    %v530 = vlaneseq
    %v531 = vshrl.u32 %v530, 7
    %v532 = vsub.s32 0, %v531
    %v533 = vrot.slane %v529, %v532
    %v534 = vmul.f32 %v533, %v526
    %v535 = vmul.f32 %v533, %v528
    %v536 = vadd.f32 %v505, %v534
    %v537 = vadd.f32 %v506, %v535
    %v538 = vld [vmem:[#allocation5 + $0x30] sm:$0x1]
    %v539 = vlaneseq
    %v540 = vshrl.u32 %v539, 7
    %v541 = vsub.s32 0, %v540
    %v542 = vrot.slane %v538, %v541
    %v543 = vmul.f32 %v542, %v526
    %v544 = vmul.f32 %v542, %v528
    %v545 = vadd.f32 %v514, %v543
    %v546 = vadd.f32 %v515, %v544
    %v547 = vld [vmem:[#allocation5 + $0x33] sm:$0x1]
    %v548 = vlaneseq
    %v549 = vshrl.u32 %v548, 7
    %v550 = vsub.s32 0, %v549
    %v551 = vrot.slane %v547, %v550
    %v552 = vmul.f32 %v551, %v526
    %v553 = vmul.f32 %v551, %v528
    %v554 = vadd.f32 %v523, %v552
    %v555 = vadd.f32 %v524, %v553
    %556 = vrot.lane.b32.xlu0 %v440, 96
    %v557 = vpop.permute.xlu0 %556
    %558 = vrot.lane.b32.xlu0 %v441, 96
    %v559 = vpop.permute.xlu0 %558
    %v560 = vld [vmem:[#allocation5 + $0x2e] sm:$0x1]
    %v561 = vlaneseq
    %v562 = vshrl.u32 %v561, 7
    %v563 = vsub.s32 0, %v562
    %v564 = vrot.slane %v560, %v563
    %v565 = vmul.f32 %v564, %v557
    %v566 = vmul.f32 %v564, %v559
    %v567 = vadd.f32 %v536, %v565
    %v568 = vadd.f32 %v537, %v566
    %v569 = vld [vmem:[#allocation5 + $0x31] sm:$0x1]
    %v570 = vlaneseq
    %v571 = vshrl.u32 %v570, 7
    %v572 = vsub.s32 0, %v571
    %v573 = vrot.slane %v569, %v572
    %v574 = vmul.f32 %v573, %v557
    %v575 = vmul.f32 %v573, %v559
    %v576 = vadd.f32 %v545, %v574
    %v577 = vadd.f32 %v546, %v575
    %v578 = vld [vmem:[#allocation5 + $0x34] sm:$0x1]
    %v579 = vlaneseq
    %v580 = vshrl.u32 %v579, 7
    %v581 = vsub.s32 0, %v580
    %v582 = vrot.slane %v578, %v581
    %v583 = vmul.f32 %v582, %v557
    %v584 = vmul.f32 %v582, %v559
    %v585 = vadd.f32 %v554, %v583
    %v586 = vadd.f32 %v555, %v584
    %587 = vrot.lane.b32.xlu0 %v440, 95
    %v588 = vpop.permute.xlu0 %587
    %589 = vrot.lane.b32.xlu0 %v441, 95
    %v590 = vpop.permute.xlu0 %589
    %v591 = vld [vmem:[#allocation5 + $0x2f] sm:$0x1]
    %v592 = vlaneseq
    %v593 = vshrl.u32 %v592, 7
    %v594 = vsub.s32 0, %v593
    %v595 = vrot.slane %v591, %v594
    %v596 = vmul.f32 %v595, %v588
    %v597 = vmul.f32 %v595, %v590
    %v598 = vadd.f32 %v567, %v596
    %v599 = vadd.f32 %v568, %v597
    %v600 = vld [vmem:[#allocation5 + $0x32] sm:$0x1]
    %v601 = vlaneseq
    %v602 = vshrl.u32 %v601, 7
    %v603 = vsub.s32 0, %v602
    %v604 = vrot.slane %v600, %v603
    %v605 = vmul.f32 %v604, %v588
    %v606 = vmul.f32 %v604, %v590
    %v607 = vadd.f32 %v576, %v605
    %v608 = vadd.f32 %v577, %v606
    %v609 = vld [vmem:[#allocation5 + $0x35] sm:$0x1]
    %v610 = vlaneseq
    %v611 = vshrl.u32 %v610, 7
    %v612 = vsub.s32 0, %v611
    %v613 = vrot.slane %v609, %v612
    %v614 = vmul.f32 %v613, %v588
    %v615 = vmul.f32 %v613, %v590
    %v616 = vadd.f32 %v585, %v614
    %v617 = vadd.f32 %v586, %v615
    %618 = vrot.lane.b32.xlu0 %v440, 65
    %v619 = vpop.permute.xlu0 %618
    %620 = vrot.lane.b32.xlu0 %v441, 65
    %v621 = vpop.permute.xlu0 %620
    %v622 = vld [vmem:[#allocation5 + $0x36] sm:$0x1]
    %v623 = vlaneseq
    %v624 = vshrl.u32 %v623, 7
    %v625 = vsub.s32 0, %v624
    %v626 = vrot.slane %v622, %v625
    %v627 = vmul.f32 %v626, %v619
    %v628 = vmul.f32 %v626, %v621
    %v629 = vadd.f32 %v598, %v627
    %v630 = vadd.f32 %v599, %v628
    %v631 = vld [vmem:[#allocation5 + $0x39] sm:$0x1]
    %v632 = vlaneseq
    %v633 = vshrl.u32 %v632, 7
    %v634 = vsub.s32 0, %v633
    %v635 = vrot.slane %v631, %v634
    %v636 = vmul.f32 %v635, %v619
    %v637 = vmul.f32 %v635, %v621
    %v638 = vadd.f32 %v607, %v636
    %v639 = vadd.f32 %v608, %v637
    %v640 = vld [vmem:[#allocation5 + $0x3c] sm:$0x1]
    %v641 = vlaneseq
    %v642 = vshrl.u32 %v641, 7
    %v643 = vsub.s32 0, %v642
    %v644 = vrot.slane %v640, %v643
    %v645 = vmul.f32 %v644, %v619
    %v646 = vmul.f32 %v644, %v621
    %v647 = vadd.f32 %v616, %v645
    %v648 = vadd.f32 %v617, %v646
    %649 = vrot.lane.b32.xlu0 %v440, 64
    %v650 = vpop.permute.xlu0 %649
    %651 = vrot.lane.b32.xlu0 %v441, 64
    %v652 = vpop.permute.xlu0 %651
    %v653 = vld [vmem:[#allocation5 + $0x37] sm:$0x1]
    %v654 = vlaneseq
    %v655 = vshrl.u32 %v654, 7
    %v656 = vsub.s32 0, %v655
    %v657 = vrot.slane %v653, %v656
    %v658 = vmul.f32 %v657, %v650
    %v659 = vmul.f32 %v657, %v652
    %v660 = vadd.f32 %v629, %v658
    %v661 = vadd.f32 %v630, %v659
    %v662 = vld [vmem:[#allocation5 + $0x3a] sm:$0x1]
    %v663 = vlaneseq
    %v664 = vshrl.u32 %v663, 7
    %v665 = vsub.s32 0, %v664
    %v666 = vrot.slane %v662, %v665
    %v667 = vmul.f32 %v666, %v650
    %v668 = vmul.f32 %v666, %v652
    %v669 = vadd.f32 %v638, %v667
    %v670 = vadd.f32 %v639, %v668
    %v671 = vld [vmem:[#allocation5 + $0x3d] sm:$0x1]
    %v672 = vlaneseq
    %v673 = vshrl.u32 %v672, 7
    %v674 = vsub.s32 0, %v673
    %v675 = vrot.slane %v671, %v674
    %v676 = vmul.f32 %v675, %v650
    %v677 = vmul.f32 %v675, %v652
    %v678 = vadd.f32 %v647, %v676
    %v679 = vadd.f32 %v648, %v677
    %680 = vrot.lane.b32.xlu0 %v440, 63
    %v681 = vpop.permute.xlu0 %680
    %682 = vrot.lane.b32.xlu0 %v441, 63
    %v683 = vpop.permute.xlu0 %682
    %v684 = vld [vmem:[#allocation5 + $0x38] sm:$0x1]
    %v685 = vlaneseq
    %v686 = vshrl.u32 %v685, 7
    %v687 = vsub.s32 0, %v686
    %v688 = vrot.slane %v684, %v687
    %v689 = vmul.f32 %v688, %v681
    %v690 = vmul.f32 %v688, %v683
    %v691 = vadd.f32 %v660, %v689
    %v692 = vadd.f32 %v661, %v690
    %v693 = vld [vmem:[#allocation5 + $0x3b] sm:$0x1]
    %v694 = vlaneseq
    %v695 = vshrl.u32 %v694, 7
    %v696 = vsub.s32 0, %v695
    %v697 = vrot.slane %v693, %v696
    %v698 = vmul.f32 %v697, %v681
    %v699 = vmul.f32 %v697, %v683
    %v700 = vadd.f32 %v669, %v698
    %v701 = vadd.f32 %v670, %v699
    %v702 = vld [vmem:[#allocation5 + $0x3e] sm:$0x1]
    %v703 = vlaneseq
    %v704 = vshrl.u32 %v703, 7
    %v705 = vsub.s32 0, %v704
    %v706 = vrot.slane %v702, %v705
    %v707 = vmul.f32 %v706, %v681
    %v708 = vmul.f32 %v706, %v683
    %v709 = vadd.f32 %v678, %v707
    %v710 = vadd.f32 %v679, %v708
    %711 = vrot.lane.b32.xlu0 %v440, 33
    %v712 = vpop.permute.xlu0 %711
    %713 = vrot.lane.b32.xlu0 %v441, 33
    %v714 = vpop.permute.xlu0 %713
    %v715 = vld [vmem:[#allocation5 + $0x3f] sm:$0x1]
    %v716 = vlaneseq
    %v717 = vshrl.u32 %v716, 7
    %v718 = vsub.s32 0, %v717
    %v719 = vrot.slane %v715, %v718
    %v720 = vmul.f32 %v719, %v712
    %v721 = vmul.f32 %v719, %v714
    %v722 = vadd.f32 %v691, %v720
    %v723 = vadd.f32 %v692, %v721
    %v724 = vld [vmem:[#allocation5 + $0x42] sm:$0x1]
    %v725 = vlaneseq
    %v726 = vshrl.u32 %v725, 7
    %v727 = vsub.s32 0, %v726
    %v728 = vrot.slane %v724, %v727
    %v729 = vmul.f32 %v728, %v712
    %v730 = vmul.f32 %v728, %v714
    %v731 = vadd.f32 %v700, %v729
    %v732 = vadd.f32 %v701, %v730
    %v733 = vld [vmem:[#allocation5 + $0x45] sm:$0x1]
    %v734 = vlaneseq
    %v735 = vshrl.u32 %v734, 7
    %v736 = vsub.s32 0, %v735
    %v737 = vrot.slane %v733, %v736
    %v738 = vmul.f32 %v737, %v712
    %v739 = vmul.f32 %v737, %v714
    %v740 = vadd.f32 %v709, %v738
    %v741 = vadd.f32 %v710, %v739
    %742 = vrot.lane.b32.xlu0 %v440, 32
    %v743 = vpop.permute.xlu0 %742
    %744 = vrot.lane.b32.xlu0 %v441, 32
    %v745 = vpop.permute.xlu0 %744
    %v746 = vld [vmem:[#allocation5 + $0x40] sm:$0x1]
    %v747 = vlaneseq
    %v748 = vshrl.u32 %v747, 7
    %v749 = vsub.s32 0, %v748
    %v750 = vrot.slane %v746, %v749
    %v751 = vmul.f32 %v750, %v743
    %v752 = vmul.f32 %v750, %v745
    %v753 = vadd.f32 %v722, %v751
    %v754 = vadd.f32 %v723, %v752
    %v755 = vld [vmem:[#allocation5 + $0x43] sm:$0x1]
    %v756 = vlaneseq
    %v757 = vshrl.u32 %v756, 7
    %v758 = vsub.s32 0, %v757
    %v759 = vrot.slane %v755, %v758
    %v760 = vmul.f32 %v759, %v743
    %v761 = vmul.f32 %v759, %v745
    %v762 = vadd.f32 %v731, %v760
    %v763 = vadd.f32 %v732, %v761
    %v764 = vld [vmem:[#allocation5 + $0x46] sm:$0x1]
    %v765 = vlaneseq
    %v766 = vshrl.u32 %v765, 7
    %v767 = vsub.s32 0, %v766
    %v768 = vrot.slane %v764, %v767
    %v769 = vmul.f32 %v768, %v743
    %v770 = vmul.f32 %v768, %v745
    %v771 = vadd.f32 %v740, %v769
    %v772 = vadd.f32 %v741, %v770
    %773 = vrot.lane.b32.xlu0 %v440, 31
    %v774 = vpop.permute.xlu0 %773
    %775 = vrot.lane.b32.xlu0 %v441, 31
    %v776 = vpop.permute.xlu0 %775
    %v777 = vld [vmem:[#allocation5 + $0x41] sm:$0x1]
    %v778 = vlaneseq
    %v779 = vshrl.u32 %v778, 7
    %v780 = vsub.s32 0, %v779
    %v781 = vrot.slane %v777, %v780
    %v782 = vmul.f32 %v781, %v774
    %v783 = vmul.f32 %v781, %v776
    %v784 = vadd.f32 %v753, %v782
    %v785 = vadd.f32 %v754, %v783
    %v786 = vld [vmem:[#allocation5 + $0x44] sm:$0x1]
    %v787 = vlaneseq
    %v788 = vshrl.u32 %v787, 7
    %v789 = vsub.s32 0, %v788
    %v790 = vrot.slane %v786, %v789
    %v791 = vmul.f32 %v790, %v774
    %v792 = vmul.f32 %v790, %v776
    %v793 = vadd.f32 %v762, %v791
    %v794 = vadd.f32 %v763, %v792
    %v795 = vld [vmem:[#allocation5 + $0x47] sm:$0x1]
    %v796 = vlaneseq
    %v797 = vshrl.u32 %v796, 7
    %v798 = vsub.s32 0, %v797
    %v799 = vrot.slane %v795, %v798
    %v800 = vmul.f32 %v799, %v774
    %v801 = vmul.f32 %v799, %v776
    %v802 = vadd.f32 %v771, %v800
    %v803 = vadd.f32 %v772, %v801
    %v806 = vrot.slane %v802, 1
    %v807 = vrot.slane %v803, 1
    %v808 = vsel %vm409, %v806, %v807
    %v811 = vsel %vm409, %v807, 0.0
    %v814 = vrot.slane %v784, 7
    %v815 = vrot.slane %v785, 7
    %v816 = vsel %vm418, %v814, %v815
    %v819 = vsel %vm418, 0.0, %v814
    %v820 = vadd.f32 %v793, %v808
    %v821 = vadd.f32 %v794, %v811
    %v822 = vadd.f32 %v820, %v819
    %v823 = vadd.f32 %v821, %v816
    %v824 = vld [vmem:[%s2 + $0x1] sm:$0x1]
    %v825 = vlaneseq
    %v826 = vshrl.u32 %v825, 7
    %v827 = vsub.s32 0, %v826
    %v828 = vrot.slane %v824, %v827
    %v829 = vadd.f32 %v822, %v828
    %v830 = vadd.f32 %v823, %v828
    %v831 = vadd.f32 %v43, %v829
    %v832 = vadd.f32 %v44, %v830
    %vm833 = vcmp.gt.f32.partialorder %v831, 0.0
    %vm834 = vcmp.gt.f32.partialorder %v832, 0.0
    %v835 = vmul.f32 %v831, 0.2
    %v836 = vmul.f32 %v832, 0.2
    %v837 = vsel %vm833, %v831, %v835
    %v838 = vsel %vm834, %v832, %v836
    %839 = vst [vmem:[#allocation7] sm:$0xff] %v837
    %840 = vst [vmem:[#allocation7 + $0x8] sm:$0xff] %v838
    // Predicated region
    $region22: #{tpu_custom_call.1} parent=1 // pred_check
      _
    $region23: #{tpu_custom_call.1} parent=1 // pred_check_branch
      %842 = sbr.rel (0) target = $region25
    $region24: #{tpu_custom_call.1} parent=1 // pred_region
      %s844 = ssub.s32 256, 256
      %845 = vsyncadd [#allocation4], %s844
      %s846 = sshll.u32 [#allocation7], 4
      %s847 = int_to_ptr.vmem [resolvable:$true] %s846
      %852 = dma.vmem_to_hbm [thread:$0]  %s847, 256, %s3, [#allocation4], 128, 128, 8
    $region25: #{tpu_custom_call.1} parent=1 // pred_fallthru
      _
    // Predicated region
    $region26: #{tpu_custom_call.1} parent=1 // pred_check
      _
    $region27: #{tpu_custom_call.1} parent=1 // pred_check_branch
      %854 = sbr.rel (0) target = $region29
    $region28: #{tpu_custom_call.1} parent=1 // pred_region
      %855 = dma.done [#allocation4], 256
    $region29: #{tpu_custom_call.1} parent=1 // pred_fallthru
      _
    %856 = vsyncpa [#allocation3], 1
    %857 = vsyncpa [#allocation6], 1
    %858 = vsyncpa [#allocation4], 1

</llo_original>
